<compile_context>
chip_gen: v7x
topology: tpu7x:2x2x1
jax: 0.10.0
libtpu: 0.0.40
codegen_flags: <defaults>
</compile_context>

<pallas_src>
import math
import functools

import jax
import jax.numpy as jnp
from jax import lax
from jax.experimental import pallas as pl
from jax.experimental.pallas import tpu as pltpu


def _round_up(x, m):
    return ((x + m - 1) // m) * m


def _norm_classifier_kernel(feat_ref, wn_ref, x_ref, featn_ref, acc_ref,
                            *, pool, hw_true):
    """Grid = (batch tiles, spatial tiles). Spatial axis is the reduction."""
    k = pl.program_id(1)
    nk = pl.num_programs(1)

    # --- init accumulator for this batch tile -------------------------------
    @pl.when(k == 0)
    def _():
        if pool == "avg":
            acc_ref[...] = jnp.zeros_like(acc_ref)
        else:  # max
            acc_ref[...] = jnp.full(acc_ref.shape, -jnp.inf, dtype=acc_ref.dtype)

    # --- accumulate this spatial block --------------------------------------
    feat = feat_ref[...].astype(jnp.float32)          # (TN, THW, C), C = lanes
    if pool == "avg":
        acc_ref[...] += jnp.sum(feat, axis=1)          # running SUM (÷HW later)
    elif pool == "max":
        acc_ref[...] = jnp.maximum(acc_ref[...], jnp.max(feat, axis=1))
    else:
        raise ValueError("unsupported pool")

    # --- finalize: normalize + cosine matmul + store ------------------------
    @pl.when(k == nk - 1)
    def _():
        if pool == "avg":
            pooled = acc_ref[...] * jnp.float32(1.0 / hw_true)  # true H*W mean
        else:
            pooled = acc_ref[...]

        eps = jnp.float32(1e-12)                       # F.normalize default eps
        f_norm = jnp.sqrt(jnp.sum(pooled * pooled, axis=1, keepdims=True))
        feat_n = pooled / jnp.maximum(f_norm, eps)     # (TN, C)

        # Cosine logits: contract C of feat_n against C of (pre-normalized)
        # weights — no transpose materialized, MXU-fed directly.
        x = lax.dot_general(
            feat_n, wn_ref[...],
            dimension_numbers=(((1,), (1,)), ((), ())),
            preferred_element_type=jnp.float32)        # (TN, nattr_pad)

        x_ref[...] = x.astype(x_ref.dtype)
        featn_ref[...] = feat_n.astype(featn_ref.dtype)


def norm_classifier_forward(feature, logits, pool="avg", *,
                            tn_block=None, thw_block=None, feat_dtype=None):
    """feature: (N, C, H, W), logits: (nattr, C). Returns ([x], feat_n)."""
    n, c, h, w = feature.shape
    hw = h * w
    nattr = logits.shape[0]

    # --- weight normalization hoisted out of the grid (tiny op) -------------
    eps = jnp.float32(1e-12)
    w32 = logits.astype(jnp.float32)
    wn = w32 / jnp.maximum(
        jnp.sqrt(jnp.sum(w32 * w32, axis=1, keepdims=True)), eps)

    # Pad nattr to a multiple of 128 -> lane-dense x stores (sliced back below).
    nattr_pad = _round_up(nattr, 128)
    if nattr_pad != nattr:
        wn = jnp.pad(wn, ((0, nattr_pad - nattr), (0, 0)))

    # --- layout: (N, HW, C) so C is the lane dim -----------------------------
    feat = feature.reshape(n, c, hw).transpose(0, 2, 1)   # (N, HW, C)
    if feat_dtype is not None:
        # Optional bf16 feature path: halves the dominant HBM read; pooling
        # still accumulates in f32 inside the kernel.
        feat = feat.astype(feat_dtype)
    itemsize = jnp.dtype(feat.dtype).itemsize

    # --- tile selection -------------------------------------------------------
    if tn_block is None:
        tn_block = min(_round_up(n, 8), 64)
    tn_block = max(8, _round_up(tn_block, 8))
    n_pad = _round_up(n, tn_block)

    if thw_block is None:
        # ~2 MiB feature block; x2 double-buffered this stays well inside the
        # default scoped VMEM on every generation (16 MiB v5e, 32 MiB v6e/v7x,
        # 64 MiB physical on v7x).
        budget = 2 * 1024 * 1024
        thw_block = max(8, budget // max(1, tn_block * c * itemsize))
    thw_block = min(_round_up(hw, 8), max(8, _round_up(thw_block, 8)))
    hw_pad = _round_up(hw, thw_block)

    # Padding: zeros are neutral for the running SUM (we divide by the true
    # H*W at finalize); -inf is neutral for max. Padded batch rows are sliced
    # off after the call.
    pad_val = 0.0 if pool == "avg" else -jnp.inf
    if n_pad != n or hw_pad != hw:
        feat = jnp.pad(feat, ((0, n_pad - n), (0, hw_pad - hw), (0, 0)),
                       constant_values=pad_val)

    grid = (n_pad // tn_block, hw_pad // thw_block)

    # --- VMEM budget / compiler params ---------------------------------------
    vmem_need = (
        2 * tn_block * thw_block * c * itemsize   # feature, double-buffered
        + 2 * nattr_pad * c * 4                   # resident normalized weights
        + 2 * tn_block * nattr_pad * 4            # x output block
        + 2 * tn_block * c * 4                    # feat_n output block
        + tn_block * c * 4                        # accumulator scratch
    )
    vmem_limit = int(min(max(vmem_need + (4 << 20), 16 << 20), 48 << 20))

    cost = pl.CostEstimate(
        flops=int(n_pad * hw_pad * c + 2 * n_pad * c * nattr_pad),
        transcendentals=0,
        bytes_accessed=int(feat.size * itemsize + wn.size * 4
                           + n_pad * (nattr_pad + c) * 4),
    )

    kernel = functools.partial(_norm_classifier_kernel, pool=pool, hw_true=hw)

    x_pad, featn_pad = pl.pallas_call(
        kernel,
        grid=grid,
        in_specs=[
            pl.BlockSpec((tn_block, thw_block, c), lambda i, k: (i, k, 0)),
            pl.BlockSpec((nattr_pad, c), lambda i, k: (0, 0)),   # resident
        ],
        out_specs=(
            pl.BlockSpec((tn_block, nattr_pad), lambda i, k: (i, 0)),
            pl.BlockSpec((tn_block, c), lambda i, k: (i, 0)),
        ),
        out_shape=(
            jax.ShapeDtypeStruct((n_pad, nattr_pad), jnp.float32),
            jax.ShapeDtypeStruct((n_pad, c), jnp.float32),
        ),
        scratch_shapes=[pltpu.VMEM((tn_block, c), jnp.float32)],
        compiler_params=pltpu.CompilerParams(
            dimension_semantics=("parallel", "arbitrary"),
            vmem_limit_bytes=vmem_limit,
        ),
        cost_estimate=cost,
    )(feat, wn)

    x = x_pad[:n, :nattr]
    feat_n = featn_pad[:n, :]
    # Match PyTorch return signature: ([x], feat_n)
    return [x], feat_n


def init_norm_classifier_params(key, nattr, c_in):
    """Deterministic init mirroring nn.Parameter uniform_(-stdv, stdv)."""
    stdv = 1.0 / math.sqrt(c_in)
    return jax.random.uniform(key, (nattr, c_in), dtype=jnp.float32,
                              minval=-stdv, maxval=stdv)


if __name__ == "__main__":
    key = jax.random.PRNGKey(0)
    k_feat, k_w = jax.random.split(key)

    # Small shapes: batch=2, c_in=32, spatial 16x16, nattr=8
    N, C, H, W = 2, 32, 16, 16
    NATTR = 8

    feature = jax.random.normal(k_feat, (N, C, H, W), dtype=jnp.float32)
    logits = init_norm_classifier_params(k_w, NATTR, C)

    # thw_block=64 forces 4 reduction steps to exercise the accumulator path.
    (x_list, feat_n) = norm_classifier_forward(feature, logits, pool="avg",
                                               thw_block=64)
    x = x_list[0]
    jax.block_until_ready((x, feat_n))

    # Reference check in plain JAX (same math as the PyTorch module).
    pooled_ref = jnp.mean(feature.reshape(N, C, -1), axis=-1)
    fn_ref = pooled_ref / jnp.maximum(
        jnp.linalg.norm(pooled_ref, axis=1, keepdims=True), 1e-12)
    wn_ref = logits / jnp.maximum(
        jnp.linalg.norm(logits, axis=1, keepdims=True), 1e-12)
    x_ref = fn_ref @ wn_ref.T

    assert x.shape == (N, NATTR) and feat_n.shape == (N, C)
    assert jnp.allclose(x, x_ref, atol=1e-5, rtol=1e-5)
    assert jnp.allclose(feat_n, fn_ref, atol=1e-5, rtol=1e-5)

    # Also check max pool path once.
    (xm_list, featm_n) = norm_classifier_forward(feature, logits, pool="max",
                                                 thw_block=64)
    pooled_m = jnp.max(feature.reshape(N, C, -1), axis=-1)
    fm_ref = pooled_m / jnp.maximum(
        jnp.linalg.norm(pooled_m, axis=1, keepdims=True), 1e-12)
    assert jnp.allclose(xm_list[0], fm_ref @ wn_ref.T, atol=1e-5, rtol=1e-5)
    assert jnp.allclose(featm_n, fm_ref, atol=1e-5, rtol=1e-5)

    print("KERNEL_OK")
</pallas_src>

<mosaic_0001>
module attributes {stable_mosaic.version = 11 : i64} {
  func.func @_norm_classifier_kernel(%arg0: i32, %arg1: i32, %arg2: memref<8x64x32xf32, #tpu.memory_space<vmem>>, %arg3: memref<128x32xf32, #tpu.memory_space<vmem>>, %arg4: memref<8x128xf32, #tpu.memory_space<vmem>>, %arg5: memref<8x32xf32, #tpu.memory_space<vmem>>, %arg6: memref<8x32xf32, #tpu.memory_space<vmem>>) attributes {dimension_semantics = [#tpu.dimension_semantics<parallel>, #tpu.dimension_semantics<arbitrary>], iteration_bounds = array<i64: 1, 4>, scalar_prefetch = 0 : i64, scratch_operands = 1 : i64, tpu.core_type = #tpu.core_type<tc>, window_params = [{transform_indices = @transform_0, window_bounds = array<i64: 8, 64, 32>}, {pipeline_mode = #tpu.pipeline_mode<synchronous>, transform_indices = @transform_1, window_bounds = array<i64: 128, 32>}, {transform_indices = @transform_2, window_bounds = array<i64: 8, 128>}, {transform_indices = @transform_3, window_bounds = array<i64: 8, 32>}]} {
    %c0_i32 = arith.constant 0 : i32
    %0 = arith.cmpi eq, %arg1, %c0_i32 : i32
    %1 = arith.extui %0 : i1 to i32
    %c0_i32_0 = arith.constant 0 : i32
    %2 = arith.cmpi ne, %1, %c0_i32_0 : i32
    scf.if %2 {
      %cst_8 = arith.constant 0.000000e+00 : f32
      %11 = vector.broadcast %cst_8 : f32 to vector<8x32xf32>
      %c0_9 = arith.constant 0 : index
      %c0_10 = arith.constant 0 : index
      %12 = vector.load %arg6[%c0_9, %c0_10] : memref<8x32xf32, #tpu.memory_space<vmem>>, vector<8x32xf32>
      tpu.vector_store %arg6[%c0_9, %c0_10], %11 {strides = array<i32>} : memref<8x32xf32, #tpu.memory_space<vmem>>, vector<8x32xf32>,
    } else {
    }
    %c0 = arith.constant 0 : index
    %c0_1 = arith.constant 0 : index
    %c0_2 = arith.constant 0 : index
    %3 = vector.load %arg2[%c0, %c0_1, %c0_2] : memref<8x64x32xf32, #tpu.memory_space<vmem>>, vector<8x64x32xf32>
    %c0_3 = arith.constant 0 : index
    %c0_4 = arith.constant 0 : index
    %4 = vector.load %arg6[%c0_3, %c0_4] : memref<8x32xf32, #tpu.memory_space<vmem>>, vector<8x32xf32>
    %cst = arith.constant dense<0.000000e+00> : vector<8x32xf32>
    %5 = vector.multi_reduction <add>, %3, %cst [1] : vector<8x64x32xf32> to vector<8x32xf32>
    %6 = arith.addf %4, %5 : vector<8x32xf32>
    %c0_5 = arith.constant 0 : index
    %c0_6 = arith.constant 0 : index
    %7 = vector.load %arg6[%c0_5, %c0_6] : memref<8x32xf32, #tpu.memory_space<vmem>>, vector<8x32xf32>
    tpu.vector_store %arg6[%c0_5, %c0_6], %6 {strides = array<i32>} : memref<8x32xf32, #tpu.memory_space<vmem>>, vector<8x32xf32>,
    %c3_i32 = arith.constant 3 : i32
    %8 = arith.cmpi eq, %arg1, %c3_i32 : i32
    %9 = arith.extui %8 : i1 to i32
    %c0_i32_7 = arith.constant 0 : i32
    %10 = arith.cmpi ne, %9, %c0_i32_7 : i32
    scf.if %10 {
      %c0_8 = arith.constant 0 : index
      %c0_9 = arith.constant 0 : index
      %11 = vector.load %arg6[%c0_8, %c0_9] : memref<8x32xf32, #tpu.memory_space<vmem>>, vector<8x32xf32>
      %cst_10 = arith.constant 3.906250e-03 : f32
      %12 = vector.broadcast %cst_10 : f32 to vector<8x32xf32>
      %13 = arith.mulf %11, %12 : vector<8x32xf32>
      %14 = arith.mulf %13, %13 : vector<8x32xf32>
      %cst_11 = arith.constant dense<0.000000e+00> : vector<8xf32>
      %15 = vector.multi_reduction <add>, %14, %cst_11 [1] : vector<8x32xf32> to vector<8xf32>
      %16 = vector.shape_cast %15 : vector<8xf32> to vector<8x1xf32>
      %17 = math.sqrt %16 : vector<8x1xf32>
      %cst_12 = arith.constant 9.99999996E-13 : f32
      %18 = vector.broadcast %cst_12 : f32 to vector<8x1xf32>
      %19 = arith.maximumf %17, %18 : vector<8x1xf32>
      %20 = vector.broadcast %19 : vector<8x1xf32> to vector<8x32xf32>
      %21 = arith.divf %13, %20 : vector<8x32xf32>
      %c0_13 = arith.constant 0 : index
      %c0_14 = arith.constant 0 : index
      %22 = vector.load %arg3[%c0_13, %c0_14] : memref<128x32xf32, #tpu.memory_space<vmem>>, vector<128x32xf32>
      %cst_15 = arith.constant dense<0.000000e+00> : vector<8x128xf32>
      %23 = tpu.matmul %21, %22, %cst_15 {dimension_numbers = #tpu.dot_dimension_numbers<[1], [1], [0], [0], [0, 0, 1, 0], [], []>} : vector<8x32xf32>, vector<128x32xf32>, vector<8x128xf32> -> vector<8x128xf32>
      %c0_16 = arith.constant 0 : index
      %c0_17 = arith.constant 0 : index
      %24 = vector.load %arg4[%c0_16, %c0_17] : memref<8x128xf32, #tpu.memory_space<vmem>>, vector<8x128xf32>
      tpu.vector_store %arg4[%c0_16, %c0_17], %23 {strides = array<i32>} : memref<8x128xf32, #tpu.memory_space<vmem>>, vector<8x128xf32>,
      %c0_18 = arith.constant 0 : index
      %c0_19 = arith.constant 0 : index
      %25 = vector.load %arg5[%c0_18, %c0_19] : memref<8x32xf32, #tpu.memory_space<vmem>>, vector<8x32xf32>
      tpu.vector_store %arg5[%c0_18, %c0_19], %21 {strides = array<i32>} : memref<8x32xf32, #tpu.memory_space<vmem>>, vector<8x32xf32>,
    } else {
    }
    return
  }
  func.func @transform_0(%arg0: i32, %arg1: i32) -> (i32, i32, i32) {
    %c0_i32 = arith.constant 0 : i32
    %c0_i32_0 = arith.constant 0 : i32
    return %arg0, %arg1, %c0_i32 : i32, i32, i32
  }
  func.func @transform_1(%arg0: i32, %arg1: i32) -> (i32, i32) {
    %c0_i32 = arith.constant 0 : i32
    %c0_i32_0 = arith.constant 0 : i32
    %c0_i32_1 = arith.constant 0 : i32
    return %c0_i32, %c0_i32_0 : i32, i32
  }
  func.func @transform_2(%arg0: i32, %arg1: i32) -> (i32, i32) {
    %c0_i32 = arith.constant 0 : i32
    %c0_i32_0 = arith.constant 0 : i32
    return %arg0, %c0_i32 : i32, i32
  }
  func.func @transform_3(%arg0: i32, %arg1: i32) -> (i32, i32) {
    %c0_i32 = arith.constant 0 : i32
    %c0_i32_0 = arith.constant 0 : i32
    return %arg0, %c0_i32 : i32, i32
  }
}

</mosaic_0001>

<llo_original>
// kernel: tpu_custom_call.1
$region0: #{tpu_custom_call.1}
  #allocation0 [shape = 'u32[]', space=smem, size = 0x4, offset = 0x4, fixed_abs, tag = 'smem constant byte address 0x4 - core index']
  #allocation1 [shape = 'u32[144,128]{1,0:T(1,128)}', space=vmem, size = 0x12000, scoped, tag = 'internal scratch']
  #allocation2 [shape = 'f32[8,32]{1,0:T(8,128)}', space=vmem, size = 0x1000, scoped, tag = 'scratch operand']
  %s0 = inlined_call_operand.vmem [shape: f32[8,256,32], index: 0, kind: input, shape index: {}]
  %s1 = inlined_call_operand.vmem [shape: f32[128,32], index: 1, kind: input, shape index: {}]
  %s2 = inlined_call_operand.hbm [shape: f32[8,128], index: 2, kind: output, shape index: {0}]
  %s3 = inlined_call_operand.hbm [shape: f32[8,32], index: 3, kind: output, shape index: {1}]
  %4 = xla_tuple %s2, %s3
  %s5 = sld [smem:[#allocation0]]
  $region95: #{tpu_custom_call.1} parent=0
    _
  %s7 = ssub.s32 1, %s5
  %s8 = scalar_select 0, %s7, %s5
  $region1: #{tpu_custom_call.1} parent=0
    #allocation3 [shape = 'u8[524288]{0}', space=vmem, size = 0x80000, scoped, tag = 'input window, operand 0']
    #allocation4 [shape = 'u8[4096]{0}', space=vmem, size = 0x1000, scoped, tag = 'output window, operand 0, single buffered']
    #allocation5 [shape = 's32[2]{0}', space=sflag, size = 0x8, scoped, tag = 'scoped memory for tpu_custom_call.1']
    #allocation6 [shape = 'u8[4096]{0}', space=vmem, size = 0x1000, scoped, tag = 'output window, operand 1, single buffered']
    #allocation7 [shape = 's32[1]{0}', space=sflag, size = 0x4, scoped, tag = 'scoped memory for tpu_custom_call.1']
    %9 = vsyncpa [#allocation5], 0
    %10 = vsyncpa [#allocation7], 0
    loop: start=0, step=1, limit=6
    $region2: #{tpu_custom_call.1} parent=1 // loop_pre_header
      _
    $region3: #{tpu_custom_call.1} parent=1 // loop_header
      %s12 = sphi 0, %s16
      %p13 = scmp.ge.s32.totalorder %s12, 6
      %s19 = sphi 0, %s31
      %s20 = sphi 0, %s27
      %s21 = sphi 0, %s19
      %s22 = sphi 0, %s20
      %s23 = sphi 0, %s21
      %s24 = sphi 0, %s22
      %s36 = sphi 0, %s38
      %s39 = sphi 0, %s36
      %s40 = sphi 0, %s39
      %s56 = sphi 0, %s40
      %s60 = sphi 0, %s60
      %s62 = sphi 0, %s60
      %s63 = sphi 0, %s62
      %s77 = sphi 0, %s63
      %s83 = sphi 0, %s85
      %s86 = sphi 0, %s83
      %s87 = sphi 0, %s86
      %s103 = sphi 0, %s87
      %s109 = sphi 0, %s111
      %s112 = sphi 0, %s109
      %s113 = sphi 0, %s112
      %s129 = sphi 0, %s113
    $region4: #{tpu_custom_call.1} parent=1 // loop_header_branch
      %15 = sbr.rel (%p13) target = $region8
    $region5: #{tpu_custom_call.1} parent=1 // loop_body
      %s17 = ssub.s32 %s12, 1
      %s18 = ssub.s32 %s12, 2
      %s25 = sadd.s32 1, %s20
      %p26 = scmp.ge.s32.totalorder %s25, 4
      %s27 = scalar_select %p26, 0, %s25
      %s28 = sadd.s32 1, %s19
      %s29 = scalar_select %p26, %s28, %s19
      %p30 = scmp.ge.s32.totalorder %s29, 1
      %s31 = scalar_select %p30, 0, %s29
      %s32 = ssub.s32 %s19, %s31
      %s33 = ssub.s32 %s20, %s27
      %s34 = sor.u32 %s32, %s33
      %p35 = scmp.eq.s32.totalorder %s34, 0
      %s37 = sadd.s32 %s36, 1
      %s38 = scalar_select %p35, %s36, %s37
      %p41 = pneg %p35
      %p42 = scmp.eq.s32.totalorder %s12, 3
      %p43 = por %p41, %p42
      %p44 = scmp.ne.s32.totalorder %s36, %s39
      %p45 = scmp.eq.s32.totalorder %s12, 0
      %p46 = por %p44, %p45
      %p47 = scmp.ne.s32.totalorder %s36, %s39
      %p48 = scmp.eq.s32.totalorder %s17, 3
      %p49 = por %p47, %p48
      %p50 = scmp.ne.s32.totalorder %s39, %s40
      %p51 = scmp.eq.s32.totalorder %s17, 0
      %p52 = por %p50, %p51
      %p53 = scmp.ne.s32.totalorder %s39, %s40
      %p54 = scmp.eq.s32.totalorder %s18, 3
      %p55 = por %p53, %p54
      %p57 = scmp.ne.s32.totalorder %s40, %s56
      %p58 = scmp.eq.s32.totalorder %s18, 0
      %p59 = por %p57, %p58
      %s61 = sadd.s32 %s60, 1
      %p64 = scmp.eq.s32.totalorder %s12, 3
      %p65 = scmp.ne.s32.totalorder %s60, %s62
      %p66 = scmp.eq.s32.totalorder %s12, 0
      %p67 = por %p65, %p66
      %p68 = scmp.ne.s32.totalorder %s60, %s62
      %p69 = scmp.eq.s32.totalorder %s17, 3
      %p70 = por %p68, %p69
      %p71 = scmp.ne.s32.totalorder %s62, %s63
      %p72 = scmp.eq.s32.totalorder %s17, 0
      %p73 = por %p71, %p72
      %p74 = scmp.ne.s32.totalorder %s62, %s63
      %p75 = scmp.eq.s32.totalorder %s18, 3
      %p76 = por %p74, %p75
      %p78 = scmp.ne.s32.totalorder %s63, %s77
      %p79 = scmp.eq.s32.totalorder %s18, 0
      %p80 = por %p78, %p79
      %s81 = ssub.s32 %s19, %s31
      %p82 = scmp.eq.s32.totalorder %s81, 0
      %s84 = sadd.s32 %s83, 1
      %s85 = scalar_select %p82, %s83, %s84
      %p88 = pneg %p82
      %p89 = scmp.eq.s32.totalorder %s12, 3
      %p90 = por %p88, %p89
      %p91 = scmp.ne.s32.totalorder %s83, %s86
      %p92 = scmp.eq.s32.totalorder %s12, 0
      %p93 = por %p91, %p92
      %p94 = scmp.ne.s32.totalorder %s83, %s86
      %p95 = scmp.eq.s32.totalorder %s17, 3
      %p96 = por %p94, %p95
      %p97 = scmp.ne.s32.totalorder %s86, %s87
      %p98 = scmp.eq.s32.totalorder %s17, 0
      %p99 = por %p97, %p98
      %p100 = scmp.ne.s32.totalorder %s86, %s87
      %p101 = scmp.eq.s32.totalorder %s18, 3
      %p102 = por %p100, %p101
      %p104 = scmp.ne.s32.totalorder %s87, %s103
      %p105 = scmp.eq.s32.totalorder %s18, 0
      %p106 = por %p104, %p105
      %s107 = ssub.s32 %s19, %s31
      %p108 = scmp.eq.s32.totalorder %s107, 0
      %s110 = sadd.s32 %s109, 1
      %s111 = scalar_select %p108, %s109, %s110
      %p114 = pneg %p108
      %p115 = scmp.eq.s32.totalorder %s12, 3
      %p116 = por %p114, %p115
      %p117 = scmp.ne.s32.totalorder %s109, %s112
      %p118 = scmp.eq.s32.totalorder %s12, 0
      %p119 = por %p117, %p118
      %p120 = scmp.ne.s32.totalorder %s109, %s112
      %p121 = scmp.eq.s32.totalorder %s17, 3
      %p122 = por %p120, %p121
      %p123 = scmp.ne.s32.totalorder %s112, %s113
      %p124 = scmp.eq.s32.totalorder %s17, 0
      %p125 = por %p123, %p124
      %p126 = scmp.ne.s32.totalorder %s112, %s113
      %p127 = scmp.eq.s32.totalorder %s18, 3
      %p128 = por %p126, %p127
      %p130 = scmp.ne.s32.totalorder %s113, %s129
      %p131 = scmp.eq.s32.totalorder %s18, 0
      %p132 = por %p130, %p131
      %p133 = scmp.le.s32.totalorder 1, %s12
      %p134 = scmp.lt.s32.totalorder %s12, 5
      %p135 = pnand %p133, %p134
      %p136 = pneg %p135
      // Predicated region
      $region9: #{tpu_custom_call.1} parent=5 // pred_check
        _
      $region10: #{tpu_custom_call.1} parent=5 // pred_check_branch
        %138 = sbr.rel (%p135) target = $region12
      $region11: #{tpu_custom_call.1} parent=5 // pred_region
        %s139 = ssub.s32 %s12, 1
        // Predicated region
        $region13: #{tpu_custom_call.1} parent=11 // pred_check
          %p140 = pneg %p73
        $region14: #{tpu_custom_call.1} parent=11 // pred_check_branch
          %142 = sbr.rel (%p140) target = $region16
        $region15: #{tpu_custom_call.1} parent=11 // pred_region
          _
        $region16: #{tpu_custom_call.1} parent=11 // pred_fallthru
          _
      $region12: #{tpu_custom_call.1} parent=5 // pred_fallthru
        _
      %p143 = scmp.lt.s32.totalorder %s12, 4
      // Predicated region
      $region17: #{tpu_custom_call.1} parent=5 // pred_check
        %p144 = pneg %p143
      $region18: #{tpu_custom_call.1} parent=5 // pred_check_branch
        %146 = sbr.rel (%p144) target = $region20
      $region19: #{tpu_custom_call.1} parent=5 // pred_region
        // Predicated region
        $region21: #{tpu_custom_call.1} parent=19 // pred_check
          %p147 = pneg %p46
        $region22: #{tpu_custom_call.1} parent=19 // pred_check_branch
          %149 = sbr.rel (%p147) target = $region24
        $region23: #{tpu_custom_call.1} parent=19 // pred_region
          %s150 = sand.u32 %s36, 1
          %s151 = sand.u32 %s36, 1
          %s152 = smul.addr %s151, 512
          %s153 = scalar_lea.vmem [#allocation3], %s152
          %s154 = smul.u32 8, %s19
          %s155 = smul.u32 8, %s20
          %s156 = smul.addr %s154, 32
          %s157 = sadd.s32 %s155, %s156
          %s158 = smul.addr %s157, 8
          %s159 = scalar_lea.vmem %s0, %s158
          // Predicated region
          $region25: #{tpu_custom_call.1} parent=23 // pred_check
            _
          $region26: #{tpu_custom_call.1} parent=23 // pred_check_branch
            %161 = sbr.rel (0) target = $region28
          $region27: #{tpu_custom_call.1} parent=23 // pred_region
            // Predicated region
            $region29: #{tpu_custom_call.1} parent=27 // pred_check
              _
            $region30: #{tpu_custom_call.1} parent=27 // pred_check_branch
              %163 = sbr.rel (0) target = $region32
            $region31: #{tpu_custom_call.1} parent=27 // pred_region
              // Predicated region
              $region44: #{tpu_custom_call.1} parent=31 // pred_check
                _
              $region45: #{tpu_custom_call.1} parent=31 // pred_check_branch
                %304 = sbr.rel (0) target = $region47
              $region46: #{tpu_custom_call.1} parent=31 // pred_region
                loop: start=0, step=1, limit=1
                $region48: #{tpu_custom_call.1} parent=46 // loop_pre_header
                  _
                $region49: #{tpu_custom_call.1} parent=46 // loop_header
                  %s306 = sphi 0, %s310
                  %p307 = scmp.ge.s32.totalorder %s306, 1
                  %s311 = sphi %s159, %s159
                  %s312 = sphi %s153, %s153
                $region50: #{tpu_custom_call.1} parent=46 // loop_header_branch
                  %309 = sbr.rel (%p307) target = $region54
                $region51: #{tpu_custom_call.1} parent=46 // loop_body
                  %v313 = vld [vmem:[%s311] sm:$0xff]
                  %314 = vst [vmem:[%s312] sm:$0xff] %v313
                  %v315 = vld [vmem:[%s311 + $0x8] sm:$0xff]
                  %316 = vst [vmem:[%s312 + $0x8] sm:$0xff] %v315
                  %v317 = vld [vmem:[%s311 + $0x10] sm:$0xff]
                  %318 = vst [vmem:[%s312 + $0x10] sm:$0xff] %v317
                  %v319 = vld [vmem:[%s311 + $0x18] sm:$0xff]
                  %320 = vst [vmem:[%s312 + $0x18] sm:$0xff] %v319
                  %v321 = vld [vmem:[%s311 + $0x20] sm:$0xff]
                  %322 = vst [vmem:[%s312 + $0x20] sm:$0xff] %v321
                  %v323 = vld [vmem:[%s311 + $0x28] sm:$0xff]
                  %324 = vst [vmem:[%s312 + $0x28] sm:$0xff] %v323
                  %v325 = vld [vmem:[%s311 + $0x30] sm:$0xff]
                  %326 = vst [vmem:[%s312 + $0x30] sm:$0xff] %v325
                  %v327 = vld [vmem:[%s311 + $0x38] sm:$0xff]
                  %328 = vst [vmem:[%s312 + $0x38] sm:$0xff] %v327
                  %v329 = vld [vmem:[%s311 + $0x100] sm:$0xff]
                  %330 = vst [vmem:[%s312 + $0x40] sm:$0xff] %v329
                  %v331 = vld [vmem:[%s311 + $0x108] sm:$0xff]
                  %332 = vst [vmem:[%s312 + $0x48] sm:$0xff] %v331
                  %v333 = vld [vmem:[%s311 + $0x110] sm:$0xff]
                  %334 = vst [vmem:[%s312 + $0x50] sm:$0xff] %v333
                  %v335 = vld [vmem:[%s311 + $0x118] sm:$0xff]
                  %336 = vst [vmem:[%s312 + $0x58] sm:$0xff] %v335
                  %v337 = vld [vmem:[%s311 + $0x120] sm:$0xff]
                  %338 = vst [vmem:[%s312 + $0x60] sm:$0xff] %v337
                  %v339 = vld [vmem:[%s311 + $0x128] sm:$0xff]
                  %340 = vst [vmem:[%s312 + $0x68] sm:$0xff] %v339
                  %v341 = vld [vmem:[%s311 + $0x130] sm:$0xff]
                  %342 = vst [vmem:[%s312 + $0x70] sm:$0xff] %v341
                  %v343 = vld [vmem:[%s311 + $0x138] sm:$0xff]
                  %344 = vst [vmem:[%s312 + $0x78] sm:$0xff] %v343
                  %v345 = vld [vmem:[%s311 + $0x200] sm:$0xff]
                  %346 = vst [vmem:[%s312 + $0x80] sm:$0xff] %v345
                  %v347 = vld [vmem:[%s311 + $0x208] sm:$0xff]
                  %348 = vst [vmem:[%s312 + $0x88] sm:$0xff] %v347
                  %v349 = vld [vmem:[%s311 + $0x210] sm:$0xff]
                  %350 = vst [vmem:[%s312 + $0x90] sm:$0xff] %v349
                  %v351 = vld [vmem:[%s311 + $0x218] sm:$0xff]
                  %352 = vst [vmem:[%s312 + $0x98] sm:$0xff] %v351
                  %v353 = vld [vmem:[%s311 + $0x220] sm:$0xff]
                  %354 = vst [vmem:[%s312 + $0xa0] sm:$0xff] %v353
                  %v355 = vld [vmem:[%s311 + $0x228] sm:$0xff]
                  %356 = vst [vmem:[%s312 + $0xa8] sm:$0xff] %v355
                  %v357 = vld [vmem:[%s311 + $0x230] sm:$0xff]
                  %358 = vst [vmem:[%s312 + $0xb0] sm:$0xff] %v357
                  %v359 = vld [vmem:[%s311 + $0x238] sm:$0xff]
                  %360 = vst [vmem:[%s312 + $0xb8] sm:$0xff] %v359
                  %v361 = vld [vmem:[%s311 + $0x300] sm:$0xff]
                  %362 = vst [vmem:[%s312 + $0xc0] sm:$0xff] %v361
                  %v363 = vld [vmem:[%s311 + $0x308] sm:$0xff]
                  %364 = vst [vmem:[%s312 + $0xc8] sm:$0xff] %v363
                  %v365 = vld [vmem:[%s311 + $0x310] sm:$0xff]
                  %366 = vst [vmem:[%s312 + $0xd0] sm:$0xff] %v365
                  %v367 = vld [vmem:[%s311 + $0x318] sm:$0xff]
                  %368 = vst [vmem:[%s312 + $0xd8] sm:$0xff] %v367
                  %v369 = vld [vmem:[%s311 + $0x320] sm:$0xff]
                  %370 = vst [vmem:[%s312 + $0xe0] sm:$0xff] %v369
                  %v371 = vld [vmem:[%s311 + $0x328] sm:$0xff]
                  %372 = vst [vmem:[%s312 + $0xe8] sm:$0xff] %v371
                  %v373 = vld [vmem:[%s311 + $0x330] sm:$0xff]
                  %374 = vst [vmem:[%s312 + $0xf0] sm:$0xff] %v373
                  %v375 = vld [vmem:[%s311 + $0x338] sm:$0xff]
                  %376 = vst [vmem:[%s312 + $0xf8] sm:$0xff] %v375
                  %v377 = vld [vmem:[%s311 + $0x400] sm:$0xff]
                  %378 = vst [vmem:[%s312 + $0x100] sm:$0xff] %v377
                  %v379 = vld [vmem:[%s311 + $0x408] sm:$0xff]
                  %380 = vst [vmem:[%s312 + $0x108] sm:$0xff] %v379
                  %v381 = vld [vmem:[%s311 + $0x410] sm:$0xff]
                  %382 = vst [vmem:[%s312 + $0x110] sm:$0xff] %v381
                  %v383 = vld [vmem:[%s311 + $0x418] sm:$0xff]
                  %384 = vst [vmem:[%s312 + $0x118] sm:$0xff] %v383
                  %v385 = vld [vmem:[%s311 + $0x420] sm:$0xff]
                  %386 = vst [vmem:[%s312 + $0x120] sm:$0xff] %v385
                  %v387 = vld [vmem:[%s311 + $0x428] sm:$0xff]
                  %388 = vst [vmem:[%s312 + $0x128] sm:$0xff] %v387
                  %v389 = vld [vmem:[%s311 + $0x430] sm:$0xff]
                  %390 = vst [vmem:[%s312 + $0x130] sm:$0xff] %v389
                  %v391 = vld [vmem:[%s311 + $0x438] sm:$0xff]
                  %392 = vst [vmem:[%s312 + $0x138] sm:$0xff] %v391
                  %v393 = vld [vmem:[%s311 + $0x500] sm:$0xff]
                  %394 = vst [vmem:[%s312 + $0x140] sm:$0xff] %v393
                  %v395 = vld [vmem:[%s311 + $0x508] sm:$0xff]
                  %396 = vst [vmem:[%s312 + $0x148] sm:$0xff] %v395
                  %v397 = vld [vmem:[%s311 + $0x510] sm:$0xff]
                  %398 = vst [vmem:[%s312 + $0x150] sm:$0xff] %v397
                  %v399 = vld [vmem:[%s311 + $0x518] sm:$0xff]
                  %400 = vst [vmem:[%s312 + $0x158] sm:$0xff] %v399
                  %v401 = vld [vmem:[%s311 + $0x520] sm:$0xff]
                  %402 = vst [vmem:[%s312 + $0x160] sm:$0xff] %v401
                  %v403 = vld [vmem:[%s311 + $0x528] sm:$0xff]
                  %404 = vst [vmem:[%s312 + $0x168] sm:$0xff] %v403
                  %v405 = vld [vmem:[%s311 + $0x530] sm:$0xff]
                  %406 = vst [vmem:[%s312 + $0x170] sm:$0xff] %v405
                  %v407 = vld [vmem:[%s311 + $0x538] sm:$0xff]
                  %408 = vst [vmem:[%s312 + $0x178] sm:$0xff] %v407
                  %v409 = vld [vmem:[%s311 + $0x600] sm:$0xff]
                  %410 = vst [vmem:[%s312 + $0x180] sm:$0xff] %v409
                  %v411 = vld [vmem:[%s311 + $0x608] sm:$0xff]
                  %412 = vst [vmem:[%s312 + $0x188] sm:$0xff] %v411
                  %v413 = vld [vmem:[%s311 + $0x610] sm:$0xff]
                  %414 = vst [vmem:[%s312 + $0x190] sm:$0xff] %v413
                  %v415 = vld [vmem:[%s311 + $0x618] sm:$0xff]
                  %416 = vst [vmem:[%s312 + $0x198] sm:$0xff] %v415
                  %v417 = vld [vmem:[%s311 + $0x620] sm:$0xff]
                  %418 = vst [vmem:[%s312 + $0x1a0] sm:$0xff] %v417
                  %v419 = vld [vmem:[%s311 + $0x628] sm:$0xff]
                  %420 = vst [vmem:[%s312 + $0x1a8] sm:$0xff] %v419
                  %v421 = vld [vmem:[%s311 + $0x630] sm:$0xff]
                  %422 = vst [vmem:[%s312 + $0x1b0] sm:$0xff] %v421
                  %v423 = vld [vmem:[%s311 + $0x638] sm:$0xff]
                  %424 = vst [vmem:[%s312 + $0x1b8] sm:$0xff] %v423
                  %v425 = vld [vmem:[%s311 + $0x700] sm:$0xff]
                  %426 = vst [vmem:[%s312 + $0x1c0] sm:$0xff] %v425
                  %v427 = vld [vmem:[%s311 + $0x708] sm:$0xff]
                  %428 = vst [vmem:[%s312 + $0x1c8] sm:$0xff] %v427
                  %v429 = vld [vmem:[%s311 + $0x710] sm:$0xff]
                  %430 = vst [vmem:[%s312 + $0x1d0] sm:$0xff] %v429
                  %v431 = vld [vmem:[%s311 + $0x718] sm:$0xff]
                  %432 = vst [vmem:[%s312 + $0x1d8] sm:$0xff] %v431
                  %v433 = vld [vmem:[%s311 + $0x720] sm:$0xff]
                  %434 = vst [vmem:[%s312 + $0x1e0] sm:$0xff] %v433
                  %v435 = vld [vmem:[%s311 + $0x728] sm:$0xff]
                  %436 = vst [vmem:[%s312 + $0x1e8] sm:$0xff] %v435
                  %v437 = vld [vmem:[%s311 + $0x730] sm:$0xff]
                  %438 = vst [vmem:[%s312 + $0x1f0] sm:$0xff] %v437
                  %v439 = vld [vmem:[%s311 + $0x738] sm:$0xff]
                  %440 = vst [vmem:[%s312 + $0x1f8] sm:$0xff] %v439
                $region52: #{tpu_custom_call.1} parent=46 // loop_footer
                  %s310 = sadd.s32 1, %s306
                $region53: #{tpu_custom_call.1} parent=46 // loop_footer_branch
                  %305 = sbr.rel target = $region49
                $region54: #{tpu_custom_call.1} parent=46 // loop_exit
                  _
              $region47: #{tpu_custom_call.1} parent=31 // pred_fallthru
                _
              // Predicated region
              $region55: #{tpu_custom_call.1} parent=31 // pred_check
                _
              $region56: #{tpu_custom_call.1} parent=31 // pred_check_branch
                %442 = sbr.rel target = $region58
              $region57: #{tpu_custom_call.1} parent=31 // pred_region
                _
              $region58: #{tpu_custom_call.1} parent=31 // pred_fallthru
                _
            $region32: #{tpu_custom_call.1} parent=27 // pred_fallthru
              _
            // Predicated region
            $region33: #{tpu_custom_call.1} parent=27 // pred_check
              _
            $region34: #{tpu_custom_call.1} parent=27 // pred_check_branch
              %165 = sbr.rel target = $region36
            $region35: #{tpu_custom_call.1} parent=27 // pred_region
              loop: start=0, step=1, limit=1
              $region37: #{tpu_custom_call.1} parent=35 // loop_pre_header
                _
              $region38: #{tpu_custom_call.1} parent=35 // loop_header
                %s168 = sphi 0, %s172
                %p169 = scmp.ge.s32.totalorder %s168, 1
                %s173 = sphi %s159, %s159
                %s174 = sphi %s153, %s153
              $region39: #{tpu_custom_call.1} parent=35 // loop_header_branch
                %171 = sbr.rel (%p169) target = $region43
              $region40: #{tpu_custom_call.1} parent=35 // loop_body
                %v175 = vld [vmem:[%s173] sm:$0xff]
                %176 = vst [vmem:[%s174] sm:$0xff] %v175
                %v177 = vld [vmem:[%s173 + $0x8] sm:$0xff]
                %178 = vst [vmem:[%s174 + $0x8] sm:$0xff] %v177
                %v179 = vld [vmem:[%s173 + $0x10] sm:$0xff]
                %180 = vst [vmem:[%s174 + $0x10] sm:$0xff] %v179
                %v181 = vld [vmem:[%s173 + $0x18] sm:$0xff]
                %182 = vst [vmem:[%s174 + $0x18] sm:$0xff] %v181
                %v183 = vld [vmem:[%s173 + $0x20] sm:$0xff]
                %184 = vst [vmem:[%s174 + $0x20] sm:$0xff] %v183
                %v185 = vld [vmem:[%s173 + $0x28] sm:$0xff]
                %186 = vst [vmem:[%s174 + $0x28] sm:$0xff] %v185
                %v187 = vld [vmem:[%s173 + $0x30] sm:$0xff]
                %188 = vst [vmem:[%s174 + $0x30] sm:$0xff] %v187
                %v189 = vld [vmem:[%s173 + $0x38] sm:$0xff]
                %190 = vst [vmem:[%s174 + $0x38] sm:$0xff] %v189
                %v191 = vld [vmem:[%s173 + $0x100] sm:$0xff]
                %192 = vst [vmem:[%s174 + $0x40] sm:$0xff] %v191
                %v193 = vld [vmem:[%s173 + $0x108] sm:$0xff]
                %194 = vst [vmem:[%s174 + $0x48] sm:$0xff] %v193
                %v195 = vld [vmem:[%s173 + $0x110] sm:$0xff]
                %196 = vst [vmem:[%s174 + $0x50] sm:$0xff] %v195
                %v197 = vld [vmem:[%s173 + $0x118] sm:$0xff]
                %198 = vst [vmem:[%s174 + $0x58] sm:$0xff] %v197
                %v199 = vld [vmem:[%s173 + $0x120] sm:$0xff]
                %200 = vst [vmem:[%s174 + $0x60] sm:$0xff] %v199
                %v201 = vld [vmem:[%s173 + $0x128] sm:$0xff]
                %202 = vst [vmem:[%s174 + $0x68] sm:$0xff] %v201
                %v203 = vld [vmem:[%s173 + $0x130] sm:$0xff]
                %204 = vst [vmem:[%s174 + $0x70] sm:$0xff] %v203
                %v205 = vld [vmem:[%s173 + $0x138] sm:$0xff]
                %206 = vst [vmem:[%s174 + $0x78] sm:$0xff] %v205
                %v207 = vld [vmem:[%s173 + $0x200] sm:$0xff]
                %208 = vst [vmem:[%s174 + $0x80] sm:$0xff] %v207
                %v209 = vld [vmem:[%s173 + $0x208] sm:$0xff]
                %210 = vst [vmem:[%s174 + $0x88] sm:$0xff] %v209
                %v211 = vld [vmem:[%s173 + $0x210] sm:$0xff]
                %212 = vst [vmem:[%s174 + $0x90] sm:$0xff] %v211
                %v213 = vld [vmem:[%s173 + $0x218] sm:$0xff]
                %214 = vst [vmem:[%s174 + $0x98] sm:$0xff] %v213
                %v215 = vld [vmem:[%s173 + $0x220] sm:$0xff]
                %216 = vst [vmem:[%s174 + $0xa0] sm:$0xff] %v215
                %v217 = vld [vmem:[%s173 + $0x228] sm:$0xff]
                %218 = vst [vmem:[%s174 + $0xa8] sm:$0xff] %v217
                %v219 = vld [vmem:[%s173 + $0x230] sm:$0xff]
                %220 = vst [vmem:[%s174 + $0xb0] sm:$0xff] %v219
                %v221 = vld [vmem:[%s173 + $0x238] sm:$0xff]
                %222 = vst [vmem:[%s174 + $0xb8] sm:$0xff] %v221
                %v223 = vld [vmem:[%s173 + $0x300] sm:$0xff]
                %224 = vst [vmem:[%s174 + $0xc0] sm:$0xff] %v223
                %v225 = vld [vmem:[%s173 + $0x308] sm:$0xff]
                %226 = vst [vmem:[%s174 + $0xc8] sm:$0xff] %v225
                %v227 = vld [vmem:[%s173 + $0x310] sm:$0xff]
                %228 = vst [vmem:[%s174 + $0xd0] sm:$0xff] %v227
                %v229 = vld [vmem:[%s173 + $0x318] sm:$0xff]
                %230 = vst [vmem:[%s174 + $0xd8] sm:$0xff] %v229
                %v231 = vld [vmem:[%s173 + $0x320] sm:$0xff]
                %232 = vst [vmem:[%s174 + $0xe0] sm:$0xff] %v231
                %v233 = vld [vmem:[%s173 + $0x328] sm:$0xff]
                %234 = vst [vmem:[%s174 + $0xe8] sm:$0xff] %v233
                %v235 = vld [vmem:[%s173 + $0x330] sm:$0xff]
                %236 = vst [vmem:[%s174 + $0xf0] sm:$0xff] %v235
                %v237 = vld [vmem:[%s173 + $0x338] sm:$0xff]
                %238 = vst [vmem:[%s174 + $0xf8] sm:$0xff] %v237
                %v239 = vld [vmem:[%s173 + $0x400] sm:$0xff]
                %240 = vst [vmem:[%s174 + $0x100] sm:$0xff] %v239
                %v241 = vld [vmem:[%s173 + $0x408] sm:$0xff]
                %242 = vst [vmem:[%s174 + $0x108] sm:$0xff] %v241
                %v243 = vld [vmem:[%s173 + $0x410] sm:$0xff]
                %244 = vst [vmem:[%s174 + $0x110] sm:$0xff] %v243
                %v245 = vld [vmem:[%s173 + $0x418] sm:$0xff]
                %246 = vst [vmem:[%s174 + $0x118] sm:$0xff] %v245
                %v247 = vld [vmem:[%s173 + $0x420] sm:$0xff]
                %248 = vst [vmem:[%s174 + $0x120] sm:$0xff] %v247
                %v249 = vld [vmem:[%s173 + $0x428] sm:$0xff]
                %250 = vst [vmem:[%s174 + $0x128] sm:$0xff] %v249
                %v251 = vld [vmem:[%s173 + $0x430] sm:$0xff]
                %252 = vst [vmem:[%s174 + $0x130] sm:$0xff] %v251
                %v253 = vld [vmem:[%s173 + $0x438] sm:$0xff]
                %254 = vst [vmem:[%s174 + $0x138] sm:$0xff] %v253
                %v255 = vld [vmem:[%s173 + $0x500] sm:$0xff]
                %256 = vst [vmem:[%s174 + $0x140] sm:$0xff] %v255
                %v257 = vld [vmem:[%s173 + $0x508] sm:$0xff]
                %258 = vst [vmem:[%s174 + $0x148] sm:$0xff] %v257
                %v259 = vld [vmem:[%s173 + $0x510] sm:$0xff]
                %260 = vst [vmem:[%s174 + $0x150] sm:$0xff] %v259
                %v261 = vld [vmem:[%s173 + $0x518] sm:$0xff]
                %262 = vst [vmem:[%s174 + $0x158] sm:$0xff] %v261
                %v263 = vld [vmem:[%s173 + $0x520] sm:$0xff]
                %264 = vst [vmem:[%s174 + $0x160] sm:$0xff] %v263
                %v265 = vld [vmem:[%s173 + $0x528] sm:$0xff]
                %266 = vst [vmem:[%s174 + $0x168] sm:$0xff] %v265
                %v267 = vld [vmem:[%s173 + $0x530] sm:$0xff]
                %268 = vst [vmem:[%s174 + $0x170] sm:$0xff] %v267
                %v269 = vld [vmem:[%s173 + $0x538] sm:$0xff]
                %270 = vst [vmem:[%s174 + $0x178] sm:$0xff] %v269
                %v271 = vld [vmem:[%s173 + $0x600] sm:$0xff]
                %272 = vst [vmem:[%s174 + $0x180] sm:$0xff] %v271
                %v273 = vld [vmem:[%s173 + $0x608] sm:$0xff]
                %274 = vst [vmem:[%s174 + $0x188] sm:$0xff] %v273
                %v275 = vld [vmem:[%s173 + $0x610] sm:$0xff]
                %276 = vst [vmem:[%s174 + $0x190] sm:$0xff] %v275
                %v277 = vld [vmem:[%s173 + $0x618] sm:$0xff]
                %278 = vst [vmem:[%s174 + $0x198] sm:$0xff] %v277
                %v279 = vld [vmem:[%s173 + $0x620] sm:$0xff]
                %280 = vst [vmem:[%s174 + $0x1a0] sm:$0xff] %v279
                %v281 = vld [vmem:[%s173 + $0x628] sm:$0xff]
                %282 = vst [vmem:[%s174 + $0x1a8] sm:$0xff] %v281
                %v283 = vld [vmem:[%s173 + $0x630] sm:$0xff]
                %284 = vst [vmem:[%s174 + $0x1b0] sm:$0xff] %v283
                %v285 = vld [vmem:[%s173 + $0x638] sm:$0xff]
                %286 = vst [vmem:[%s174 + $0x1b8] sm:$0xff] %v285
                %v287 = vld [vmem:[%s173 + $0x700] sm:$0xff]
                %288 = vst [vmem:[%s174 + $0x1c0] sm:$0xff] %v287
                %v289 = vld [vmem:[%s173 + $0x708] sm:$0xff]
                %290 = vst [vmem:[%s174 + $0x1c8] sm:$0xff] %v289
                %v291 = vld [vmem:[%s173 + $0x710] sm:$0xff]
                %292 = vst [vmem:[%s174 + $0x1d0] sm:$0xff] %v291
                %v293 = vld [vmem:[%s173 + $0x718] sm:$0xff]
                %294 = vst [vmem:[%s174 + $0x1d8] sm:$0xff] %v293
                %v295 = vld [vmem:[%s173 + $0x720] sm:$0xff]
                %296 = vst [vmem:[%s174 + $0x1e0] sm:$0xff] %v295
                %v297 = vld [vmem:[%s173 + $0x728] sm:$0xff]
                %298 = vst [vmem:[%s174 + $0x1e8] sm:$0xff] %v297
                %v299 = vld [vmem:[%s173 + $0x730] sm:$0xff]
                %300 = vst [vmem:[%s174 + $0x1f0] sm:$0xff] %v299
                %v301 = vld [vmem:[%s173 + $0x738] sm:$0xff]
                %302 = vst [vmem:[%s174 + $0x1f8] sm:$0xff] %v301
              $region41: #{tpu_custom_call.1} parent=35 // loop_footer
                %s172 = sadd.s32 1, %s168
              $region42: #{tpu_custom_call.1} parent=35 // loop_footer_branch
                %167 = sbr.rel target = $region38
              $region43: #{tpu_custom_call.1} parent=35 // loop_exit
                _
            $region36: #{tpu_custom_call.1} parent=27 // pred_fallthru
              _
          $region28: #{tpu_custom_call.1} parent=23 // pred_fallthru
            _
          %443 = vnop
        $region24: #{tpu_custom_call.1} parent=19 // pred_fallthru
          _
      $region20: #{tpu_custom_call.1} parent=5 // pred_fallthru
        _
      %p444 = scmp.le.s32.totalorder 1, %s12
      %p445 = scmp.lt.s32.totalorder %s12, 5
      %p446 = pnand %p444, %p445
      %p447 = pneg %p446
      // Predicated region
      $region59: #{tpu_custom_call.1} parent=5 // pred_check
        _
      $region60: #{tpu_custom_call.1} parent=5 // pred_check_branch
        %449 = sbr.rel (%p446) target = $region62
      $region61: #{tpu_custom_call.1} parent=5 // pred_region
        %s450 = ssub.s32 %s12, 1
        %s451 = sand.u32 %s39, 1
        %s452 = sand.u32 %s39, 1
        %s453 = smul.addr %s452, 512
        %s454 = scalar_lea.vmem [#allocation3], %s453
        // Predicated region
        $region63: #{tpu_custom_call.1} parent=61 // pred_check
          %p455 = pneg %p52
        $region64: #{tpu_custom_call.1} parent=61 // pred_check_branch
          %457 = sbr.rel (%p455) target = $region66
        $region65: #{tpu_custom_call.1} parent=61 // pred_region
          _
        $region66: #{tpu_custom_call.1} parent=61 // pred_fallthru
          _
        %s458 = sand.u32 %s39, 1
        %s459 = sand.u32 %s39, 1
        %s460 = smul.addr %s459, 512
        %s461 = scalar_lea.vmem [#allocation3], %s460
        %p462 = pneg %p52
        %p463 = pneg %p49
        %p464 = pneg %p73
        %p465 = pneg %p70
        %p466 = pneg %p99
        %p467 = pneg %p96
        %p468 = pneg %p125
        %p469 = pneg %p122
        %s470 = smul.u32 8, %s21
        %s471 = smul.u32 8, %s22
        %p472 = scmp.eq.s32.totalorder %s22, 0
        // Predicated region
        $region67: #{tpu_custom_call.1} parent=61 // pred_check
          %p473 = pneg %p472
        $region68: #{tpu_custom_call.1} parent=61 // pred_check_branch
          %475 = sbr.rel (%p473) target = $region70
        $region69: #{tpu_custom_call.1} parent=61 // pred_region
          %vm476 = vcmask 261120
          %477 = vst.msk [vmem:[#allocation2] sm:$0xff] %vm476, 0.0
        $region70: #{tpu_custom_call.1} parent=61 // pred_fallthru
          _
        %v478 = vld [vmem:[%s454] sm:$0xff]
        %v479 = vld [vmem:[%s454 + $0x8] sm:$0xff]
        %v480 = vld [vmem:[%s454 + $0x10] sm:$0xff]
        %v481 = vld [vmem:[%s454 + $0x18] sm:$0xff]
        %v482 = vld [vmem:[%s454 + $0x20] sm:$0xff]
        %v483 = vld [vmem:[%s454 + $0x28] sm:$0xff]
        %v484 = vld [vmem:[%s454 + $0x30] sm:$0xff]
        %v485 = vld [vmem:[%s454 + $0x38] sm:$0xff]
        %v486 = vld [vmem:[%s454 + $0x40] sm:$0xff]
        %v487 = vld [vmem:[%s454 + $0x48] sm:$0xff]
        %v488 = vld [vmem:[%s454 + $0x50] sm:$0xff]
        %v489 = vld [vmem:[%s454 + $0x58] sm:$0xff]
        %v490 = vld [vmem:[%s454 + $0x60] sm:$0xff]
        %v491 = vld [vmem:[%s454 + $0x68] sm:$0xff]
        %v492 = vld [vmem:[%s454 + $0x70] sm:$0xff]
        %v493 = vld [vmem:[%s454 + $0x78] sm:$0xff]
        %v494 = vld [vmem:[%s454 + $0x80] sm:$0xff]
        %v495 = vld [vmem:[%s454 + $0x88] sm:$0xff]
        %v496 = vld [vmem:[%s454 + $0x90] sm:$0xff]
        %v497 = vld [vmem:[%s454 + $0x98] sm:$0xff]
        %v498 = vld [vmem:[%s454 + $0xa0] sm:$0xff]
        %v499 = vld [vmem:[%s454 + $0xa8] sm:$0xff]
        %v500 = vld [vmem:[%s454 + $0xb0] sm:$0xff]
        %v501 = vld [vmem:[%s454 + $0xb8] sm:$0xff]
        %v502 = vld [vmem:[%s454 + $0xc0] sm:$0xff]
        %v503 = vld [vmem:[%s454 + $0xc8] sm:$0xff]
        %v504 = vld [vmem:[%s454 + $0xd0] sm:$0xff]
        %v505 = vld [vmem:[%s454 + $0xd8] sm:$0xff]
        %v506 = vld [vmem:[%s454 + $0xe0] sm:$0xff]
        %v507 = vld [vmem:[%s454 + $0xe8] sm:$0xff]
        %v508 = vld [vmem:[%s454 + $0xf0] sm:$0xff]
        %v509 = vld [vmem:[%s454 + $0xf8] sm:$0xff]
        %v510 = vld [vmem:[%s454 + $0x100] sm:$0xff]
        %v511 = vld [vmem:[%s454 + $0x108] sm:$0xff]
        %v512 = vld [vmem:[%s454 + $0x110] sm:$0xff]
        %v513 = vld [vmem:[%s454 + $0x118] sm:$0xff]
        %v514 = vld [vmem:[%s454 + $0x120] sm:$0xff]
        %v515 = vld [vmem:[%s454 + $0x128] sm:$0xff]
        %v516 = vld [vmem:[%s454 + $0x130] sm:$0xff]
        %v517 = vld [vmem:[%s454 + $0x138] sm:$0xff]
        %v518 = vld [vmem:[%s454 + $0x140] sm:$0xff]
        %v519 = vld [vmem:[%s454 + $0x148] sm:$0xff]
        %v520 = vld [vmem:[%s454 + $0x150] sm:$0xff]
        %v521 = vld [vmem:[%s454 + $0x158] sm:$0xff]
        %v522 = vld [vmem:[%s454 + $0x160] sm:$0xff]
        %v523 = vld [vmem:[%s454 + $0x168] sm:$0xff]
        %v524 = vld [vmem:[%s454 + $0x170] sm:$0xff]
        %v525 = vld [vmem:[%s454 + $0x178] sm:$0xff]
        %v526 = vld [vmem:[%s454 + $0x180] sm:$0xff]
        %v527 = vld [vmem:[%s454 + $0x188] sm:$0xff]
        %v528 = vld [vmem:[%s454 + $0x190] sm:$0xff]
        %v529 = vld [vmem:[%s454 + $0x198] sm:$0xff]
        %v530 = vld [vmem:[%s454 + $0x1a0] sm:$0xff]
        %v531 = vld [vmem:[%s454 + $0x1a8] sm:$0xff]
        %v532 = vld [vmem:[%s454 + $0x1b0] sm:$0xff]
        %v533 = vld [vmem:[%s454 + $0x1b8] sm:$0xff]
        %v534 = vld [vmem:[%s454 + $0x1c0] sm:$0xff]
        %v535 = vld [vmem:[%s454 + $0x1c8] sm:$0xff]
        %v536 = vld [vmem:[%s454 + $0x1d0] sm:$0xff]
        %v537 = vld [vmem:[%s454 + $0x1d8] sm:$0xff]
        %v538 = vld [vmem:[%s454 + $0x1e0] sm:$0xff]
        %v539 = vld [vmem:[%s454 + $0x1e8] sm:$0xff]
        %v540 = vld [vmem:[%s454 + $0x1f0] sm:$0xff]
        %v541 = vld [vmem:[%s454 + $0x1f8] sm:$0xff]
        %v542 = vld [vmem:[#allocation2] sm:$0xff]
        %vm543 = vcmask 261120
        %v544 = vsel %vm543, %v478, 0.0
        %v545 = vsel %vm543, %v479, 0.0
        %v546 = vadd.f32 %v544, %v545
        %v547 = vsel %vm543, %v480, 0.0
        %v548 = vadd.f32 %v546, %v547
        %v549 = vsel %vm543, %v481, 0.0
        %v550 = vadd.f32 %v548, %v549
        %v551 = vsel %vm543, %v482, 0.0
        %v552 = vadd.f32 %v550, %v551
        %v553 = vsel %vm543, %v483, 0.0
        %v554 = vadd.f32 %v552, %v553
        %v555 = vsel %vm543, %v484, 0.0
        %v556 = vadd.f32 %v554, %v555
        %v557 = vsel %vm543, %v485, 0.0
        %v558 = vadd.f32 %v556, %v557
        %v559 = vrot.slane %v558, 4
        %v560 = vadd.f32 %v558, %v559
        %v561 = vrot.slane %v560, 2
        %v562 = vadd.f32 %v560, %v561
        %v563 = vrot.slane %v562, 1
        %v564 = vadd.f32 %v562, %v563
        %v565 = vsel %vm543, %v486, 0.0
        %v566 = vsel %vm543, %v487, 0.0
        %v567 = vadd.f32 %v565, %v566
        %v568 = vsel %vm543, %v488, 0.0
        %v569 = vadd.f32 %v567, %v568
        %v570 = vsel %vm543, %v489, 0.0
        %v571 = vadd.f32 %v569, %v570
        %v572 = vsel %vm543, %v490, 0.0
        %v573 = vadd.f32 %v571, %v572
        %v574 = vsel %vm543, %v491, 0.0
        %v575 = vadd.f32 %v573, %v574
        %v576 = vsel %vm543, %v492, 0.0
        %v577 = vadd.f32 %v575, %v576
        %v578 = vsel %vm543, %v493, 0.0
        %v579 = vadd.f32 %v577, %v578
        %v580 = vrot.slane %v579, 4
        %v581 = vadd.f32 %v579, %v580
        %v582 = vrot.slane %v581, 2
        %v583 = vadd.f32 %v581, %v582
        %v584 = vrot.slane %v583, 1
        %v585 = vadd.f32 %v583, %v584
        %v586 = vsel %vm543, %v494, 0.0
        %v587 = vsel %vm543, %v495, 0.0
        %v588 = vadd.f32 %v586, %v587
        %v589 = vsel %vm543, %v496, 0.0
        %v590 = vadd.f32 %v588, %v589
        %v591 = vsel %vm543, %v497, 0.0
        %v592 = vadd.f32 %v590, %v591
        %v593 = vsel %vm543, %v498, 0.0
        %v594 = vadd.f32 %v592, %v593
        %v595 = vsel %vm543, %v499, 0.0
        %v596 = vadd.f32 %v594, %v595
        %v597 = vsel %vm543, %v500, 0.0
        %v598 = vadd.f32 %v596, %v597
        %v599 = vsel %vm543, %v501, 0.0
        %v600 = vadd.f32 %v598, %v599
        %v601 = vrot.slane %v600, 4
        %v602 = vadd.f32 %v600, %v601
        %v603 = vrot.slane %v602, 2
        %v604 = vadd.f32 %v602, %v603
        %v605 = vrot.slane %v604, 1
        %v606 = vadd.f32 %v604, %v605
        %v607 = vsel %vm543, %v502, 0.0
        %v608 = vsel %vm543, %v503, 0.0
        %v609 = vadd.f32 %v607, %v608
        %v610 = vsel %vm543, %v504, 0.0
        %v611 = vadd.f32 %v609, %v610
        %v612 = vsel %vm543, %v505, 0.0
        %v613 = vadd.f32 %v611, %v612
        %v614 = vsel %vm543, %v506, 0.0
        %v615 = vadd.f32 %v613, %v614
        %v616 = vsel %vm543, %v507, 0.0
        %v617 = vadd.f32 %v615, %v616
        %v618 = vsel %vm543, %v508, 0.0
        %v619 = vadd.f32 %v617, %v618
        %v620 = vsel %vm543, %v509, 0.0
        %v621 = vadd.f32 %v619, %v620
        %v622 = vrot.slane %v621, 4
        %v623 = vadd.f32 %v621, %v622
        %v624 = vrot.slane %v623, 2
        %v625 = vadd.f32 %v623, %v624
        %v626 = vrot.slane %v625, 1
        %v627 = vadd.f32 %v625, %v626
        %v628 = vsel %vm543, %v510, 0.0
        %v629 = vsel %vm543, %v511, 0.0
        %v630 = vadd.f32 %v628, %v629
        %v631 = vsel %vm543, %v512, 0.0
        %v632 = vadd.f32 %v630, %v631
        %v633 = vsel %vm543, %v513, 0.0
        %v634 = vadd.f32 %v632, %v633
        %v635 = vsel %vm543, %v514, 0.0
        %v636 = vadd.f32 %v634, %v635
        %v637 = vsel %vm543, %v515, 0.0
        %v638 = vadd.f32 %v636, %v637
        %v639 = vsel %vm543, %v516, 0.0
        %v640 = vadd.f32 %v638, %v639
        %v641 = vsel %vm543, %v517, 0.0
        %v642 = vadd.f32 %v640, %v641
        %v643 = vrot.slane %v642, 4
        %v644 = vadd.f32 %v642, %v643
        %v645 = vrot.slane %v644, 2
        %v646 = vadd.f32 %v644, %v645
        %v647 = vrot.slane %v646, 1
        %v648 = vadd.f32 %v646, %v647
        %v649 = vsel %vm543, %v518, 0.0
        %v650 = vsel %vm543, %v519, 0.0
        %v651 = vadd.f32 %v649, %v650
        %v652 = vsel %vm543, %v520, 0.0
        %v653 = vadd.f32 %v651, %v652
        %v654 = vsel %vm543, %v521, 0.0
        %v655 = vadd.f32 %v653, %v654
        %v656 = vsel %vm543, %v522, 0.0
        %v657 = vadd.f32 %v655, %v656
        %v658 = vsel %vm543, %v523, 0.0
        %v659 = vadd.f32 %v657, %v658
        %v660 = vsel %vm543, %v524, 0.0
        %v661 = vadd.f32 %v659, %v660
        %v662 = vsel %vm543, %v525, 0.0
        %v663 = vadd.f32 %v661, %v662
        %v664 = vrot.slane %v663, 4
        %v665 = vadd.f32 %v663, %v664
        %v666 = vrot.slane %v665, 2
        %v667 = vadd.f32 %v665, %v666
        %v668 = vrot.slane %v667, 1
        %v669 = vadd.f32 %v667, %v668
        %v670 = vsel %vm543, %v526, 0.0
        %v671 = vsel %vm543, %v527, 0.0
        %v672 = vadd.f32 %v670, %v671
        %v673 = vsel %vm543, %v528, 0.0
        %v674 = vadd.f32 %v672, %v673
        %v675 = vsel %vm543, %v529, 0.0
        %v676 = vadd.f32 %v674, %v675
        %v677 = vsel %vm543, %v530, 0.0
        %v678 = vadd.f32 %v676, %v677
        %v679 = vsel %vm543, %v531, 0.0
        %v680 = vadd.f32 %v678, %v679
        %v681 = vsel %vm543, %v532, 0.0
        %v682 = vadd.f32 %v680, %v681
        %v683 = vsel %vm543, %v533, 0.0
        %v684 = vadd.f32 %v682, %v683
        %v685 = vrot.slane %v684, 4
        %v686 = vadd.f32 %v684, %v685
        %v687 = vrot.slane %v686, 2
        %v688 = vadd.f32 %v686, %v687
        %v689 = vrot.slane %v688, 1
        %v690 = vadd.f32 %v688, %v689
        %v691 = vsel %vm543, %v534, 0.0
        %v692 = vsel %vm543, %v535, 0.0
        %v693 = vadd.f32 %v691, %v692
        %v694 = vsel %vm543, %v536, 0.0
        %v695 = vadd.f32 %v693, %v694
        %v696 = vsel %vm543, %v537, 0.0
        %v697 = vadd.f32 %v695, %v696
        %v698 = vsel %vm543, %v538, 0.0
        %v699 = vadd.f32 %v697, %v698
        %v700 = vsel %vm543, %v539, 0.0
        %v701 = vadd.f32 %v699, %v700
        %v702 = vsel %vm543, %v540, 0.0
        %v703 = vadd.f32 %v701, %v702
        %v704 = vsel %vm543, %v541, 0.0
        %v705 = vadd.f32 %v703, %v704
        %v706 = vrot.slane %v705, 4
        %v707 = vadd.f32 %v705, %v706
        %v708 = vrot.slane %v707, 2
        %v709 = vadd.f32 %v707, %v708
        %v710 = vrot.slane %v709, 1
        %v711 = vadd.f32 %v709, %v710
        %vm720 = vcmask 1041409
        %v721 = vsel %vm720, %v585, %v564
        %vm722 = vcmask 1042434
        %v723 = vsel %vm722, %v606, %v721
        %vm724 = vcmask 1043459
        %v725 = vsel %vm724, %v627, %v723
        %vm726 = vcmask 1044484
        %v727 = vsel %vm726, %v648, %v725
        %vm728 = vcmask 1045509
        %v729 = vsel %vm728, %v669, %v727
        %vm730 = vcmask 1046534
        %v731 = vsel %vm730, %v690, %v729
        %vm732 = vcmask 1047559
        %v733 = vsel %vm732, %v711, %v731
        %v735 = vadd.f32 %v542, %v733
        %736 = vst.msk [vmem:[#allocation2] sm:$0xff] %vm543, %v735
        %p737 = scmp.eq.s32.totalorder %s22, 3
        // Predicated region
        $region71: #{tpu_custom_call.1} parent=61 // pred_check
          %p738 = pneg %p737
        $region72: #{tpu_custom_call.1} parent=61 // pred_check_branch
          %740 = sbr.rel (%p738) target = $region74
        $region73: #{tpu_custom_call.1} parent=61 // pred_region
          %v741 = vld [vmem:[#allocation2] sm:$0xff]
          %v742 = vmul.f32 %v741, 0.00390625
          %v743 = vmul.f32 %v742, %v742
          %v744 = vsel %vm543, %v743, 0.0
          %745 = vadd.xlane.f32.xlu0 %v744
          %v746 = vpop.xlane.xlu0 %745
          %v747 = vrsqrt.pop %v746
          %v748 = vmul.f32 %v746, %v747
          %vm749 = vcmp.eq.f32.partialorder %v746, inf
          %v750 = vsel %vm749, %v746, %v748
          %vm751 = vcmp.eq.f32.partialorder %v746, 0.0
          %v752 = vand.u32 %v746, 2147483648
          %v753 = vsel %vm751, %v752, %v750
          %v754 = vmax.f32 %v753, 1e-12
          %v755 = vrcp.pop %v754
          %v756 = vmul.f32 %v742, %v755
          %v757 = vld [vmem:[%s1] sm:$0xff]
          %v758 = vld [vmem:[%s1 + $0x8] sm:$0xff]
          %v759 = vld [vmem:[%s1 + $0x10] sm:$0xff]
          %v760 = vld [vmem:[%s1 + $0x18] sm:$0xff]
          %v761 = vld [vmem:[%s1 + $0x20] sm:$0xff]
          %v762 = vld [vmem:[%s1 + $0x28] sm:$0xff]
          %v763 = vld [vmem:[%s1 + $0x30] sm:$0xff]
          %v764 = vld [vmem:[%s1 + $0x38] sm:$0xff]
          %v765 = vld [vmem:[%s1 + $0x40] sm:$0xff]
          %v766 = vld [vmem:[%s1 + $0x48] sm:$0xff]
          %v767 = vld [vmem:[%s1 + $0x50] sm:$0xff]
          %v768 = vld [vmem:[%s1 + $0x58] sm:$0xff]
          %v769 = vld [vmem:[%s1 + $0x60] sm:$0xff]
          %v770 = vld [vmem:[%s1 + $0x68] sm:$0xff]
          %v771 = vld [vmem:[%s1 + $0x70] sm:$0xff]
          %v772 = vld [vmem:[%s1 + $0x78] sm:$0xff]
          %v774 = vsel %vm543, %v756, 0
          %v777 = vsel %vm543, %v757, 0
          %v780 = vsel %vm543, %v758, 0
          %v783 = vsel %vm543, %v759, 0
          %v786 = vsel %vm543, %v760, 0
          %v789 = vsel %vm543, %v761, 0
          %v792 = vsel %vm543, %v762, 0
          %v795 = vsel %vm543, %v763, 0
          %v798 = vsel %vm543, %v764, 0
          %v801 = vsel %vm543, %v765, 0
          %v804 = vsel %vm543, %v766, 0
          %v807 = vsel %vm543, %v767, 0
          %v810 = vsel %vm543, %v768, 0
          %v813 = vsel %vm543, %v769, 0
          %v816 = vsel %vm543, %v770, 0
          %v819 = vsel %vm543, %v771, 0
          %v822 = vsel %vm543, %v772, 0
          %824 = vmatprep.subr.mxu0 0.0
          %825 = vmatpush1.xpose.msra.mxu0 %v777
          %826 = vmatprep.subr.mxu0 0.0
          %827 = vmatpush1.xpose.msra.mxu0 %v780
          %828 = vmatprep.subr.mxu0 0.0
          %829 = vmatpush1.xpose.msra.mxu0 %v783
          %830 = vmatprep.subr.mxu0 0.0
          %831 = vmatpush1.xpose.msra.mxu0 %v786
          %832 = vmatprep.subr.mxu0 0.0
          %833 = vmatpush1.xpose.msra.mxu0 %v789
          %834 = vmatprep.subr.mxu0 0.0
          %835 = vmatpush1.xpose.msra.mxu0 %v792
          %836 = vmatprep.subr.mxu0 0.0
          %837 = vmatpush1.xpose.msra.mxu0 %v795
          %838 = vmatprep.subr.mxu0 0.0
          %839 = vmatpush1.xpose.msra.mxu0 %v798
          %840 = vmatprep.subr.mxu0 0.0
          %841 = vmatpush1.xpose.msra.mxu0 %v801
          %842 = vmatprep.subr.mxu0 0.0
          %843 = vmatpush1.xpose.msra.mxu0 %v804
          %844 = vmatprep.subr.mxu0 0.0
          %845 = vmatpush1.xpose.msra.mxu0 %v807
          %846 = vmatprep.subr.mxu0 0.0
          %847 = vmatpush1.xpose.msra.mxu0 %v810
          %848 = vmatprep.subr.mxu0 0.0
          %849 = vmatpush1.xpose.msra.mxu0 %v813
          %850 = vmatprep.subr.mxu0 0.0
          %851 = vmatpush1.xpose.msra.mxu0 %v816
          %852 = vmatprep.subr.mxu0 0.0
          %853 = vmatpush1.xpose.msra.mxu0 %v819
          %854 = vmatprep.subr.mxu0 0.0
          %855 = vmatpush1.xpose.msra.mxu0 %v822
          %856 = vmatprep.subr.mxu0 0.0
          %857 = vmatpush1.xpose.msra.mxu0 0.0
          %858 = vmatprep.subr.mxu0 0.0
          %859 = vmatpush1.xpose.msra.mxu0 0.0
          %860 = vmatprep.subr.mxu0 0.0
          %861 = vmatpush1.xpose.msra.mxu0 0.0
          %862 = vmatprep.subr.mxu0 0.0
          %863 = vmatpush1.xpose.msra.mxu0 0.0
          %864 = vmatprep.subr.mxu0 0.0
          %865 = vmatpush1.xpose.msra.mxu0 0.0
          %866 = vmatprep.subr.mxu0 0.0
          %867 = vmatpush1.xpose.msra.mxu0 0.0
          %868 = vmatprep.subr.mxu0 0.0
          %869 = vmatpush1.xpose.msra.mxu0 0.0
          %870 = vmatprep.subr.mxu0 0.0
          %871 = vmatpush1.xpose.msra.mxu0 0.0
          %872 = vmatprep.subr.mxu0 0.0
          %873 = vmatpush1.xpose.msra.mxu0 0.0
          %874 = vmatprep.subr.mxu0 0.0
          %875 = vmatpush1.xpose.msra.mxu0 0.0
          %876 = vmatprep.subr.mxu0 0.0
          %877 = vmatpush1.xpose.msra.mxu0 0.0
          %878 = vmatprep.subr.mxu0 0.0
          %879 = vmatpush1.xpose.msra.mxu0 0.0
          %880 = vmatprep.subr.mxu0 0.0
          %881 = vmatpush1.xpose.msra.mxu0 0.0
          %882 = vmatprep.subr.mxu0 0.0
          %883 = vmatpush1.xpose.msra.mxu0 0.0
          %884 = vmatprep.subr.mxu0 0.0
          %885 = vmatpush1.xpose.msra.mxu0 0.0
          %886 = vmatprep.subr.mxu0 0.0
          %887 = vmatpush1.xpose.msra.mxu0 0.0
          %888 = vmatprep.mubr.f32.mxu0 0.0
          %889 = vmatmul.mubr.f32.gmra.mrb[0].mxu0 %v774
          %v890 = vpop.f32.mrb[0].mxu0
          %v891 = vadd.f32 0.0, %v890
          %v892 = vpop.f32.mrb[0].mxu0
          %893 = vdwg.mxu0
          %894 = vst [vmem:[#allocation4] sm:$0xff] %v891
          %895 = vst.msk [vmem:[#allocation6] sm:$0xff] %vm543, %v756
        $region74: #{tpu_custom_call.1} parent=61 // pred_fallthru
          _
        // Predicated region
        $region75: #{tpu_custom_call.1} parent=61 // pred_check
          %p896 = pneg %p96
        $region76: #{tpu_custom_call.1} parent=61 // pred_check_branch
          %898 = sbr.rel (%p896) target = $region78
        $region77: #{tpu_custom_call.1} parent=61 // pred_region
          %s900 = ssub.s32 128, 128
          %901 = vsyncadd [#allocation5], %s900
          %s902 = smul.addr %s21, 128
          %s903 = scalar_lea.hbm %s2, %s902
          %s905 = sshll.u32 [#allocation4], 4
          %s906 = int_to_ptr.vmem [resolvable:$true] %s905
          %908 = dma.vmem_to_hbm [thread:$0]  %s906, 128, %s903, [#allocation5]
        $region78: #{tpu_custom_call.1} parent=61 // pred_fallthru
          _
        // Predicated region
        $region79: #{tpu_custom_call.1} parent=61 // pred_check
          %p909 = pneg %p122
        $region80: #{tpu_custom_call.1} parent=61 // pred_check_branch
          %911 = sbr.rel (%p909) target = $region82
        $region81: #{tpu_custom_call.1} parent=61 // pred_region
          %s913 = ssub.s32 128, 128
          %914 = vsyncadd [#allocation7], %s913
          %s915 = smul.addr %s21, 128
          %s916 = scalar_lea.hbm %s3, %s915
          %s918 = sshll.u32 [#allocation6], 4
          %s919 = int_to_ptr.vmem [resolvable:$true] %s918
          %921 = dma.vmem_to_hbm [thread:$0]  %s919, 128, %s916, [#allocation7]
        $region82: #{tpu_custom_call.1} parent=61 // pred_fallthru
          _
        // Predicated region
        $region83: #{tpu_custom_call.1} parent=61 // pred_check
          %p922 = pneg %p96
        $region84: #{tpu_custom_call.1} parent=61 // pred_check_branch
          %924 = sbr.rel (%p922) target = $region86
        $region85: #{tpu_custom_call.1} parent=61 // pred_region
          %925 = dma.done [#allocation5], 128
        $region86: #{tpu_custom_call.1} parent=61 // pred_fallthru
          _
        // Predicated region
        $region87: #{tpu_custom_call.1} parent=61 // pred_check
          %p926 = pneg %p122
        $region88: #{tpu_custom_call.1} parent=61 // pred_check_branch
          %928 = sbr.rel (%p926) target = $region90
        $region89: #{tpu_custom_call.1} parent=61 // pred_region
          %929 = dma.done [#allocation7], 128
        $region90: #{tpu_custom_call.1} parent=61 // pred_fallthru
          _
      $region62: #{tpu_custom_call.1} parent=5 // pred_fallthru
        _
      %p930 = scmp.le.s32.totalorder 2, %s12
      // Predicated region
      $region91: #{tpu_custom_call.1} parent=5 // pred_check
        %p931 = pneg %p930
      $region92: #{tpu_custom_call.1} parent=5 // pred_check_branch
        %933 = sbr.rel (%p931) target = $region94
      $region93: #{tpu_custom_call.1} parent=5 // pred_region
        %s934 = ssub.s32 %s12, 2
      $region94: #{tpu_custom_call.1} parent=5 // pred_fallthru
        _
    $region6: #{tpu_custom_call.1} parent=1 // loop_footer
      %s16 = sadd.s32 1, %s12
    $region7: #{tpu_custom_call.1} parent=1 // loop_footer_branch
      %11 = sbr.rel target = $region3
    $region8: #{tpu_custom_call.1} parent=1 // loop_exit
      _
    %935 = vsyncpa [#allocation5], 1
    %s936 = scalar_lea.sflag [#allocation5], 1
    %937 = vsyncpa %s936, 1
    %938 = vsyncpa [#allocation7], 1

</llo_original>
